<compile_context>
chip_gen: v7x
topology: tpu7x:2x2x1
jax: 0.10.0
libtpu: 0.0.40
codegen_flags: <defaults>
</compile_context>

<pallas_src>
import math

import jax
import jax.numpy as jnp
from jax.experimental import pallas as pl
from jax.experimental.pallas import tpu as pltpu


def _scale_kernel(s_ref, x_ref, o_ref):
    # s_ref: (br, 1) or (1, bc) f32 scale, broadcast over the tile on the VPU.
    # x_ref / o_ref: (br, bc) lane-dense VMEM tiles.
    x = x_ref[...].astype(jnp.float32)
    o_ref[...] = (x * s_ref[...]).astype(o_ref.dtype)


def _sublane_multiple(dtype):
    # Packed sublane count: 8 for 4-byte, 16 for 2-byte, 32 for 1-byte dtypes.
    itemsize = jnp.dtype(dtype).itemsize
    return 8 * max(1, 4 // itemsize)


def _round_down(v, m):
    return max(m, (v // m) * m)


def _round_up(v, m):
    return ((v + m - 1) // m) * m


def _tile_budget():
    """(per-tile byte budget, vmem_limit_bytes or None), per TPU generation."""
    try:
        kind = jax.devices()[0].device_kind.lower()
    except Exception:
        kind = ""
    if any(t in kind for t in ("v2", "v3", "v4", "v5")):
        # v5e scoped-VMEM default is only 16 MiB; 1 MiB tiles are already at
        # the knee of its ~0.8 TB/s HBM roofline.
        return 1 << 20, None
    # v6e / v7x / unknown: bigger tiles; double-buffered in+out ~16-18 MiB
    # fits the 32 MiB scoped default (and v7x's 64 MiB physical VMEM).
    return 4 << 20, 32 * 1024 * 1024


def scale_forward(x, scale):
    """x: (B, C, *spatial), scale: (C,) -> x * scale[None, :, None, ...]."""
    assert x.ndim >= 3 and x.shape[1] == scale.shape[0]
    B, C = x.shape[0], x.shape[1]
    n_spatial = math.prod(x.shape[2:])
    dtype = x.dtype
    itemsize = jnp.dtype(dtype).itemsize
    sub = _sublane_multiple(dtype)

    tile_bytes, vmem_limit = _tile_budget()
    scale_f32 = scale.astype(jnp.float32)

    # ---- choose a lane-dense 2-D view --------------------------------------
    split_k = None
    for k in range(2, x.ndim):
        if math.prod(x.shape[k:]) % 128 == 0:
            split_k = k  # earliest split -> largest 128-aligned column extent
            break

    pad_cols = 0
    if split_k is not None:
        rows = math.prod(x.shape[:split_k])
        cols = math.prod(x.shape[split_k:])
        x2 = x.reshape(rows, cols)
        lead_shape = x.shape[:split_k]
        s2 = jnp.broadcast_to(
            scale_f32.reshape((1, C) + (1,) * (split_k - 2)), lead_shape
        ).reshape(rows, 1)
        scale_is_row = False
    elif n_spatial >= 128:
        # No 128-aligned factorization: pad the lane axis of the (B*C, DHW) view.
        rows = B * C
        cols_raw = n_spatial
        cols = _round_up(cols_raw, 128)
        pad_cols = cols - cols_raw
        x2 = jnp.pad(x.reshape(rows, cols_raw), ((0, 0), (0, pad_cols)))
        s2 = jnp.broadcast_to(scale_f32[None, :], (B, C)).reshape(rows, 1)
        scale_is_row = False
    else:
        # Small-inner-dim path: (B, C*DHW) view + lane-dense expanded scale row.
        rows = B
        cols_raw = C * n_spatial
        cols = _round_up(cols_raw, 128)
        pad_cols = cols - cols_raw
        x2 = x.reshape(rows, cols_raw)
        s_row = jnp.repeat(scale_f32, n_spatial)
        if pad_cols:
            x2 = jnp.pad(x2, ((0, 0), (0, pad_cols)))
            s_row = jnp.pad(s_row, (0, pad_cols))
        s2 = s_row.reshape(1, cols)
        scale_is_row = True

    # ---- tile sizing --------------------------------------------------------
    lane_cap = 2048 if tile_bytes >= (2 << 20) else 1024
    bc = min(cols, lane_cap)  # cols and lane_cap are both 128-multiples here

    target_rows = max(1, tile_bytes // (bc * itemsize))
    if rows >= sub:
        br = _round_down(min(target_rows, rows), sub)
    else:
        br = rows  # full-extent second-to-last dim is always legal

    gr, gc = pl.cdiv(rows, br), pl.cdiv(cols, bc)
    if gr * gc == 1:
        # Keep both v7x TensorCores busy: ensure >= 2 grid steps when possible.
        if cols >= 256:
            bc = _round_down(cols // 2, 128)
        elif rows >= 2 * sub:
            br = _round_down(rows // 2, sub)
        gr, gc = pl.cdiv(rows, br), pl.cdiv(cols, bc)

    cost = pl.CostEstimate(
        flops=rows * cols,
        transcendentals=0,
        bytes_accessed=2 * rows * cols * itemsize + C * 4,
    )

    if scale_is_row:
        s_spec = pl.BlockSpec((1, bc), lambda i, j: (0, j))
    else:
        # j innermost => same scale block between consecutive steps, DMA elided.
        s_spec = pl.BlockSpec((br, 1), lambda i, j: (i, 0))

    cp_kwargs = dict(dimension_semantics=("parallel", "parallel"))
    if vmem_limit is not None:
        cp_kwargs["vmem_limit_bytes"] = vmem_limit

    out2 = pl.pallas_call(
        _scale_kernel,
        out_shape=jax.ShapeDtypeStruct((rows, cols), dtype),
        grid=(gr, gc),
        in_specs=[
            s_spec,
            pl.BlockSpec((br, bc), lambda i, j: (i, j)),
        ],
        out_specs=pl.BlockSpec((br, bc), lambda i, j: (i, j)),
        compiler_params=pltpu.CompilerParams(**cp_kwargs),
        cost_estimate=cost,
    )(s2, x2)

    if pad_cols:
        out2 = out2[:, : cols - pad_cols]
    return out2.reshape(x.shape)


if __name__ == "__main__":
    key = jax.random.PRNGKey(0)
    B, C, D, H, W = 2, 4, 4, 8, 8

    kx, ks = jax.random.split(key)
    x = jax.random.normal(kx, (B, C, D, H, W), dtype=jnp.float32)
    # deterministic per-channel scale buffer (analogous to the registered buffer)
    scale = jax.random.uniform(ks, (C,), dtype=jnp.float32, minval=0.5, maxval=1.5)

    out = jax.block_until_ready(scale_forward(x, scale))

    # reference: x * rearrange(scale, 'c -> 1 c 1 1 1')
    ref = x * scale.reshape(1, C, 1, 1, 1)
    assert out.shape == ref.shape
    assert jnp.allclose(out, ref, atol=1e-6, rtol=1e-6), "mismatch vs reference"

    print("KERNEL_OK")
</pallas_src>

<mosaic_0001>
module attributes {stable_mosaic.version = 11 : i64} {
  func.func @_scale_kernel(%arg0: i32, %arg1: i32, %arg2: memref<8x1xf32, #tpu.memory_space<vmem>>, %arg3: memref<8x128xf32, #tpu.memory_space<vmem>>, %arg4: memref<8x128xf32, #tpu.memory_space<vmem>>) attributes {dimension_semantics = [#tpu.dimension_semantics<parallel>, #tpu.dimension_semantics<parallel>], iteration_bounds = array<i64: 1, 2>, scalar_prefetch = 0 : i64, scratch_operands = 0 : i64, tpu.core_type = #tpu.core_type<tc>, window_params = [{transform_indices = @transform_0, window_bounds = array<i64: 8, 1>}, {transform_indices = @transform_1, window_bounds = array<i64: 8, 128>}, {transform_indices = @transform_2, window_bounds = array<i64: 8, 128>}]} {
    %c0 = arith.constant 0 : index
    %c0_0 = arith.constant 0 : index
    %0 = vector.load %arg3[%c0, %c0_0] : memref<8x128xf32, #tpu.memory_space<vmem>>, vector<8x128xf32>
    %c0_1 = arith.constant 0 : index
    %c0_2 = arith.constant 0 : index
    %1 = vector.load %arg2[%c0_1, %c0_2] : memref<8x1xf32, #tpu.memory_space<vmem>>, vector<8x1xf32>
    %2 = vector.broadcast %1 : vector<8x1xf32> to vector<8x128xf32>
    %3 = arith.mulf %0, %2 : vector<8x128xf32>
    %c0_3 = arith.constant 0 : index
    %c0_4 = arith.constant 0 : index
    %4 = vector.load %arg4[%c0_3, %c0_4] : memref<8x128xf32, #tpu.memory_space<vmem>>, vector<8x128xf32>
    tpu.vector_store %arg4[%c0_3, %c0_4], %3 {strides = array<i32>} : memref<8x128xf32, #tpu.memory_space<vmem>>, vector<8x128xf32>,
    return
  }
  func.func @transform_0(%arg0: i32, %arg1: i32) -> (i32, i32) {
    %c0_i32 = arith.constant 0 : i32
    %c0_i32_0 = arith.constant 0 : i32
    return %arg0, %c0_i32 : i32, i32
  }
  func.func @transform_1(%arg0: i32, %arg1: i32) -> (i32, i32) {
    %c0_i32 = arith.constant 0 : i32
    return %arg0, %arg1 : i32, i32
  }
  func.func @transform_2(%arg0: i32, %arg1: i32) -> (i32, i32) {
    %c0_i32 = arith.constant 0 : i32
    return %arg0, %arg1 : i32, i32
  }
}

</mosaic_0001>

<llo_original>
// kernel: tpu_custom_call.1
$region0: #{tpu_custom_call.1}
  #allocation0 [shape = 'u32[]', space=smem, size = 0x4, offset = 0x4, fixed_abs, tag = 'smem constant byte address 0x4 - core index']
  #allocation1 [shape = 'u32[144,128]{1,0:T(1,128)}', space=vmem, size = 0x12000, scoped, tag = 'internal scratch']
  %s0 = inlined_call_operand.vmem [shape: f32[8,1], index: 0, kind: input, shape index: {}]
  %s1 = inlined_call_operand.hbm [shape: f32[8,256], index: 1, kind: input, shape index: {}]
  %s2 = inlined_call_operand.hbm [shape: f32[8,256], index: 2, kind: output, shape index: {}]
  %s3 = sld [smem:[#allocation0]]
  $region45: #{tpu_custom_call.1} parent=0
    _
  %s5 = ssub.s32 1, %s3
  %s6 = scalar_select 0, %s5, %s3
  $region1: #{tpu_custom_call.1} parent=0
    #allocation2 [shape = 'u8[8192]{0}', space=vmem, size = 0x2000, scoped, tag = 'input window, operand 1']
    #allocation3 [shape = 's32[2]{0}', space=sflag, size = 0x8, scoped, tag = 'scoped memory for tpu_custom_call.1']
    #allocation4 [shape = 's32[2]{0}', space=sflag, size = 0x8, scoped, tag = 'scoped memory for tpu_custom_call.1']
    #allocation5 [shape = 'u8[8192]{0}', space=vmem, size = 0x2000, scoped, tag = 'output window, operand 0']
    %7 = vsyncpa [#allocation3], 0
    %s8 = scalar_lea.sflag [#allocation3], 1
    %9 = vsyncpa %s8, 0
    %10 = vsyncpa [#allocation4], 0
    %s11 = scalar_lea.sflag [#allocation4], 1
    %12 = vsyncpa %s11, 0
    loop: start=0, step=1, limit=4
    $region2: #{tpu_custom_call.1} parent=1 // loop_pre_header
      _
    $region3: #{tpu_custom_call.1} parent=1 // loop_header
      %s14 = sphi 0, %s18
      %p15 = scmp.ge.s32.totalorder %s14, 4
      %s21 = sphi 0, %s33
      %s22 = sphi 0, %s29
      %s23 = sphi 0, %s21
      %s24 = sphi 0, %s22
      %s25 = sphi 0, %s23
      %s26 = sphi 0, %s24
      %s36 = sphi 0, %s38
      %s39 = sphi 0, %s36
      %s40 = sphi 0, %s39
      %s56 = sphi 0, %s40
      %s64 = sphi 0, %s66
      %s67 = sphi 0, %s64
      %s68 = sphi 0, %s67
      %s84 = sphi 0, %s68
      %s92 = sphi 0, %s94
      %s95 = sphi 0, %s92
      %s96 = sphi 0, %s95
      %s112 = sphi 0, %s96
    $region4: #{tpu_custom_call.1} parent=1 // loop_header_branch
      %17 = sbr.rel (%p15) target = $region8
    $region5: #{tpu_custom_call.1} parent=1 // loop_body
      %s19 = ssub.s32 %s14, 1
      %s20 = ssub.s32 %s14, 2
      %s27 = sadd.s32 1, %s22
      %p28 = scmp.ge.s32.totalorder %s27, 2
      %s29 = scalar_select %p28, 0, %s27
      %s30 = sadd.s32 1, %s21
      %s31 = scalar_select %p28, %s30, %s21
      %p32 = scmp.ge.s32.totalorder %s31, 1
      %s33 = scalar_select %p32, 0, %s31
      %s34 = ssub.s32 %s21, %s33
      %p35 = scmp.eq.s32.totalorder %s34, 0
      %s37 = sadd.s32 %s36, 1
      %s38 = scalar_select %p35, %s36, %s37
      %p41 = pneg %p35
      %p42 = scmp.eq.s32.totalorder %s14, 1
      %p43 = por %p41, %p42
      %p44 = scmp.ne.s32.totalorder %s36, %s39
      %p45 = scmp.eq.s32.totalorder %s14, 0
      %p46 = por %p44, %p45
      %p47 = scmp.ne.s32.totalorder %s36, %s39
      %p48 = scmp.eq.s32.totalorder %s19, 1
      %p49 = por %p47, %p48
      %p50 = scmp.ne.s32.totalorder %s39, %s40
      %p51 = scmp.eq.s32.totalorder %s19, 0
      %p52 = por %p50, %p51
      %p53 = scmp.ne.s32.totalorder %s39, %s40
      %p54 = scmp.eq.s32.totalorder %s20, 1
      %p55 = por %p53, %p54
      %p57 = scmp.ne.s32.totalorder %s40, %s56
      %p58 = scmp.eq.s32.totalorder %s20, 0
      %p59 = por %p57, %p58
      %s60 = ssub.s32 %s21, %s33
      %s61 = ssub.s32 %s22, %s29
      %s62 = sor.u32 %s60, %s61
      %p63 = scmp.eq.s32.totalorder %s62, 0
      %s65 = sadd.s32 %s64, 1
      %s66 = scalar_select %p63, %s64, %s65
      %p69 = pneg %p63
      %p70 = scmp.eq.s32.totalorder %s14, 1
      %p71 = por %p69, %p70
      %p72 = scmp.ne.s32.totalorder %s64, %s67
      %p73 = scmp.eq.s32.totalorder %s14, 0
      %p74 = por %p72, %p73
      %p75 = scmp.ne.s32.totalorder %s64, %s67
      %p76 = scmp.eq.s32.totalorder %s19, 1
      %p77 = por %p75, %p76
      %p78 = scmp.ne.s32.totalorder %s67, %s68
      %p79 = scmp.eq.s32.totalorder %s19, 0
      %p80 = por %p78, %p79
      %p81 = scmp.ne.s32.totalorder %s67, %s68
      %p82 = scmp.eq.s32.totalorder %s20, 1
      %p83 = por %p81, %p82
      %p85 = scmp.ne.s32.totalorder %s68, %s84
      %p86 = scmp.eq.s32.totalorder %s20, 0
      %p87 = por %p85, %p86
      %s88 = ssub.s32 %s21, %s33
      %s89 = ssub.s32 %s22, %s29
      %s90 = sor.u32 %s88, %s89
      %p91 = scmp.eq.s32.totalorder %s90, 0
      %s93 = sadd.s32 %s92, 1
      %s94 = scalar_select %p91, %s92, %s93
      %p97 = pneg %p91
      %p98 = scmp.eq.s32.totalorder %s14, 1
      %p99 = por %p97, %p98
      %p100 = scmp.ne.s32.totalorder %s92, %s95
      %p101 = scmp.eq.s32.totalorder %s14, 0
      %p102 = por %p100, %p101
      %p103 = scmp.ne.s32.totalorder %s92, %s95
      %p104 = scmp.eq.s32.totalorder %s19, 1
      %p105 = por %p103, %p104
      %p106 = scmp.ne.s32.totalorder %s95, %s96
      %p107 = scmp.eq.s32.totalorder %s19, 0
      %p108 = por %p106, %p107
      %p109 = scmp.ne.s32.totalorder %s95, %s96
      %p110 = scmp.eq.s32.totalorder %s20, 1
      %p111 = por %p109, %p110
      %p113 = scmp.ne.s32.totalorder %s96, %s112
      %p114 = scmp.eq.s32.totalorder %s20, 0
      %p115 = por %p113, %p114
      %p116 = scmp.le.s32.totalorder 1, %s14
      %p117 = scmp.lt.s32.totalorder %s14, 3
      %p118 = pnand %p116, %p117
      %p119 = pneg %p118
      // Predicated region
      $region9: #{tpu_custom_call.1} parent=5 // pred_check
        _
      $region10: #{tpu_custom_call.1} parent=5 // pred_check_branch
        %121 = sbr.rel (%p118) target = $region12
      $region11: #{tpu_custom_call.1} parent=5 // pred_region
        %s122 = ssub.s32 %s14, 1
        // Predicated region
        $region13: #{tpu_custom_call.1} parent=11 // pred_check
          %p123 = pneg %p52
        $region14: #{tpu_custom_call.1} parent=11 // pred_check_branch
          %125 = sbr.rel (%p123) target = $region16
        $region15: #{tpu_custom_call.1} parent=11 // pred_region
          %p126 = scmp.lt.s32.totalorder %s23, 0
          %s127 = scalar_select %p126, %s23, 0
          %s128 = smul.addr %s127, 8
          %s129 = scalar_lea.vmem %s0, %s128
        $region16: #{tpu_custom_call.1} parent=11 // pred_fallthru
          _
      $region12: #{tpu_custom_call.1} parent=5 // pred_fallthru
        _
      %p130 = scmp.lt.s32.totalorder %s14, 2
      // Predicated region
      $region17: #{tpu_custom_call.1} parent=5 // pred_check
        %p131 = pneg %p130
      $region18: #{tpu_custom_call.1} parent=5 // pred_check_branch
        %133 = sbr.rel (%p131) target = $region20
      $region19: #{tpu_custom_call.1} parent=5 // pred_region
        // Predicated region
        $region21: #{tpu_custom_call.1} parent=19 // pred_check
          %p134 = pneg %p74
        $region22: #{tpu_custom_call.1} parent=19 // pred_check_branch
          %136 = sbr.rel (%p134) target = $region24
        $region23: #{tpu_custom_call.1} parent=19 // pred_region
          %s137 = sand.u32 %s64, 1
          %s138 = scalar_lea.sflag [#allocation3], %s137
          %s139 = sand.u32 %s64, 1
          %s140 = smul.addr %s139, 8
          %s141 = scalar_lea.vmem [#allocation2], %s140
          %s143 = ssub.s32 128, 128
          %144 = vsyncadd %s138, %s143
          %s145 = smul.addr %s21, 2
          %s146 = sadd.s32 %s22, %s145
          %s147 = smul.addr %s146, 128
          %s148 = scalar_lea.hbm %s1, %s147
          %s150 = sshll.u32 %s141, 4
          %s151 = int_to_ptr.vmem [resolvable:$true] %s150
          %153 = dma.hbm_to_vmem [thread:$0]  %s148, 128, %s151, %s138
        $region24: #{tpu_custom_call.1} parent=19 // pred_fallthru
          _
      $region20: #{tpu_custom_call.1} parent=5 // pred_fallthru
        _
      %p154 = scmp.le.s32.totalorder 1, %s14
      %p155 = scmp.lt.s32.totalorder %s14, 3
      %p156 = pnand %p154, %p155
      %p157 = pneg %p156
      // Predicated region
      $region25: #{tpu_custom_call.1} parent=5 // pred_check
        _
      $region26: #{tpu_custom_call.1} parent=5 // pred_check_branch
        %159 = sbr.rel (%p156) target = $region28
      $region27: #{tpu_custom_call.1} parent=5 // pred_region
        %s160 = ssub.s32 %s14, 1
        %s161 = sand.u32 %s67, 1
        %s162 = scalar_lea.sflag [#allocation3], %s161
        %s163 = sand.u32 %s67, 1
        %s164 = smul.addr %s163, 8
        %s165 = scalar_lea.vmem [#allocation2], %s164
        // Predicated region
        $region29: #{tpu_custom_call.1} parent=27 // pred_check
          %p166 = pneg %p80
        $region30: #{tpu_custom_call.1} parent=27 // pred_check_branch
          %168 = sbr.rel (%p166) target = $region32
        $region31: #{tpu_custom_call.1} parent=27 // pred_region
          %169 = dma.done %s162, 128
        $region32: #{tpu_custom_call.1} parent=27 // pred_fallthru
          _
        %p170 = scmp.lt.s32.totalorder %s23, 0
        %s171 = scalar_select %p170, %s23, 0
        %s172 = smul.addr %s171, 8
        %s173 = scalar_lea.vmem %s0, %s172
        %p174 = pneg %p52
        %p175 = pneg %p49
        %s176 = sand.u32 %s67, 1
        %s177 = scalar_lea.sflag [#allocation3], %s176
        %s178 = sand.u32 %s67, 1
        %s179 = smul.addr %s178, 8
        %s180 = scalar_lea.vmem [#allocation2], %s179
        %p181 = pneg %p80
        %p182 = pneg %p77
        %p183 = pneg %p108
        %p184 = pneg %p105
        %s185 = sand.u32 %s95, 1
        %s186 = scalar_lea.sflag [#allocation4], %s185
        %s187 = sand.u32 %s95, 1
        %s188 = smul.addr %s187, 8
        %s189 = scalar_lea.vmem [#allocation5], %s188
        %p190 = scmp.lt.s32.totalorder %s23, 0
        %s191 = scalar_select %p190, %s23, 0
        %s192 = smul.addr %s191, 8
        %s193 = scalar_lea.vmem %s0, %s192
        %v194 = vld [vmem:[%s165] sm:$0xff]
        %v195 = vld [vmem:[%s193] sm:$0xff]
        %197 = vset.pattern.permute.xlu0 0
        %198 = vperm.xlu0 %197, %v195
        %v199 = vpop.permute.xlu0 %198
        %v201 = vmul.f32 %v194, %v199
        %202 = vst [vmem:[%s189] sm:$0xff] %v201
        %s203 = sand.u32 %s95, 1
        %s204 = scalar_lea.sflag [#allocation4], %s203
        %s205 = sand.u32 %s95, 1
        %s206 = smul.addr %s205, 8
        %s207 = scalar_lea.vmem [#allocation5], %s206
        // Predicated region
        $region33: #{tpu_custom_call.1} parent=27 // pred_check
          %p208 = pneg %p105
        $region34: #{tpu_custom_call.1} parent=27 // pred_check_branch
          %210 = sbr.rel (%p208) target = $region36
        $region35: #{tpu_custom_call.1} parent=27 // pred_region
          %s212 = ssub.s32 128, 128
          %213 = vsyncadd %s204, %s212
          %s214 = smul.addr %s23, 2
          %s215 = sadd.s32 %s24, %s214
          %s216 = smul.addr %s215, 128
          %s217 = scalar_lea.hbm %s2, %s216
          %s219 = sshll.u32 %s207, 4
          %s220 = int_to_ptr.vmem [resolvable:$true] %s219
          %222 = dma.vmem_to_hbm [thread:$0]  %s220, 128, %s217, %s204
        $region36: #{tpu_custom_call.1} parent=27 // pred_fallthru
          _
      $region28: #{tpu_custom_call.1} parent=5 // pred_fallthru
        _
      %p223 = scmp.le.s32.totalorder 2, %s14
      // Predicated region
      $region37: #{tpu_custom_call.1} parent=5 // pred_check
        %p224 = pneg %p223
      $region38: #{tpu_custom_call.1} parent=5 // pred_check_branch
        %226 = sbr.rel (%p224) target = $region40
      $region39: #{tpu_custom_call.1} parent=5 // pred_region
        %s227 = ssub.s32 %s14, 2
        // Predicated region
        $region41: #{tpu_custom_call.1} parent=39 // pred_check
          %p228 = pneg %p111
        $region42: #{tpu_custom_call.1} parent=39 // pred_check_branch
          %230 = sbr.rel (%p228) target = $region44
        $region43: #{tpu_custom_call.1} parent=39 // pred_region
          %s231 = sand.u32 %s96, 1
          %s232 = scalar_lea.sflag [#allocation4], %s231
          %s233 = sand.u32 %s96, 1
          %s234 = smul.addr %s233, 8
          %s235 = scalar_lea.vmem [#allocation5], %s234
          %236 = dma.done %s232, 128
        $region44: #{tpu_custom_call.1} parent=39 // pred_fallthru
          _
      $region40: #{tpu_custom_call.1} parent=5 // pred_fallthru
        _
    $region6: #{tpu_custom_call.1} parent=1 // loop_footer
      %s18 = sadd.s32 1, %s14
    $region7: #{tpu_custom_call.1} parent=1 // loop_footer_branch
      %13 = sbr.rel target = $region3
    $region8: #{tpu_custom_call.1} parent=1 // loop_exit
      _
    %237 = vsyncpa [#allocation3], 1
    %s238 = scalar_lea.sflag [#allocation3], 1
    %239 = vsyncpa %s238, 1
    %240 = vsyncpa [#allocation4], 1
    %s241 = scalar_lea.sflag [#allocation4], 1
    %242 = vsyncpa %s241, 1

</llo_original>
